<compile_context>
chip_gen: v6e
topology: v6e:2x2x1
jax: 0.10.0
libtpu: 0.0.40
codegen_flags: <defaults>
</compile_context>

<pallas_src>
import jax
import jax.numpy as jnp
import numpy as np
from jax.experimental import pallas as pl
from jax.experimental.pallas import tpu as pltpu


def _round_up(x, m):
    return (x + m - 1) // m * m


def _cdiv(a, b):
    return (a + b - 1) // b


def _choose_tiles(B, T_pad, frames_per_tile):
    """Samples per grid step (multiple of 8) and #grid steps (>= 2 for megacore)."""
    s_cap = max(8, (frames_per_tile // T_pad) // 8 * 8)
    b8 = _round_up(B, 8)
    s_tile = min(s_cap, b8)
    n_tiles = _cdiv(b8, s_tile)
    if n_tiles < 2:                      # v7x has 2 TensorCores: give each a tile
        if s_tile >= 16:
            s_tile = _round_up(s_tile // 2, 8)
            n_tiles = _cdiv(b8, s_tile)
        if n_tiles < 2:
            n_tiles = 2                  # pad the batch instead
    return s_tile, n_tiles


def _vad_kernel(x_ref, y_ref, m_ref,
                w1_ref, b1_ref, w2_ref, b2_ref, w3h_ref, b3_ref,
                met_ref, z_sc):
    """One tile of s_tile samples.

    x_ref  : (Tq*s_tile, P*Din) bf16, P frames packed per row, group-major rows
    y_ref  : (s_tile, T_pad) f32 labels            (frames on the lane axis)
    m_ref  : (s_tile, T_pad) f32 valid-frame mask
    w*/b*  : block-diagonal MLP weights (constant index maps -> VMEM resident)
    b3_ref : (1, 1) f32 in SMEM
    met_ref: (s_tile, 128) per-sample [loss, acc, prec, rec, f1, 0...]
    z_sc   : (s_tile, T_pad) f32 VMEM scratch for the assembled logits
    """
    S, T_pad = y_ref.shape
    P = w3h_ref.shape[1]
    Tq = T_pad // P

    # ---- packed per-frame MLP: K=128 / N=128 bf16 MXU matmuls, f32 accumulation ----
    h1 = jnp.dot(x_ref[...], w1_ref[...], preferred_element_type=jnp.float32)
    h1 = jnp.maximum(h1 + b1_ref[...], 0.0)
    h2 = jnp.dot(h1.astype(jnp.bfloat16), w2_ref[...],
                 preferred_element_type=jnp.float32)
    h2 = jnp.maximum(h2 + b2_ref[...], 0.0)
    # H -> 1 head for all P packed frames at once: (rows, P*H) @ (P*H, P).
    zg = jnp.dot(h2.astype(jnp.bfloat16), w3h_ref[...],
                 preferred_element_type=jnp.float32)          # (Tq*S, P)

    # ---- reassemble packed rows (group-major: row = g*S + s) into lane-dense z ----
    for g in range(Tq):                                       # static unroll
        z_sc[:, g * P:(g + 1) * P] = zg[g * S:(g + 1) * S, :]
    z = z_sc[...] + b3_ref[0, 0]                              # (S, T_pad)

    y = y_ref[...]
    m = m_ref[...]

    # ---- per-frame statistics (masked), lane-dense f32 ----
    # Stable BCE-with-logits.  log(1+x) kept (vs log1p) for guaranteed Mosaic
    # lowering; abs error < 1e-7 and the reference uses the same formula.
    loss_t = (jnp.maximum(z, 0.0) - z * y
              + jnp.log(1.0 + jnp.exp(-jnp.abs(z)))) * m
    pred = (z > 0.0).astype(jnp.float32)                      # sigmoid(z) > 0.5
    correct = (pred == y).astype(jnp.float32) * m
    tp = pred * y * m
    fp = pred * (1.0 - y) * m
    fn = (1.0 - pred) * y * m

    # ---- per-sample sums: plain lane (XLU) reductions ----
    loss_s = jnp.sum(loss_t, axis=-1, keepdims=True)
    cor_s = jnp.sum(correct, axis=-1, keepdims=True)
    tp_s = jnp.sum(tp, axis=-1, keepdims=True)
    fp_s = jnp.sum(fp, axis=-1, keepdims=True)
    fn_s = jnp.sum(fn, axis=-1, keepdims=True)
    cnt_s = jnp.sum(m, axis=-1, keepdims=True)

    # Per-sample metrics; zero-length (padding) samples yield all zeros.
    denom = jnp.maximum(cnt_s, 1.0)
    loss_i = loss_s / denom
    acc_i = cor_s / denom
    prec_i = jnp.where(tp_s + fp_s > 0.0,
                       tp_s / jnp.maximum(tp_s + fp_s, 1e-12), 0.0)
    rec_i = jnp.where(tp_s + fn_s > 0.0,
                      tp_s / jnp.maximum(tp_s + fn_s, 1e-12), 0.0)
    f1_i = jnp.where(prec_i + rec_i > 0.0,
                     2.0 * prec_i * rec_i / jnp.maximum(prec_i + rec_i, 1e-12),
                     0.0)

    met_ref[...] = jnp.zeros_like(met_ref)
    met_ref[:, 0:1] = loss_i
    met_ref[:, 1:2] = acc_i
    met_ref[:, 2:3] = prec_i
    met_ref[:, 3:4] = rec_i
    met_ref[:, 4:5] = f1_i


def vad_forward(params, feats, vad_labels, input_lengths, split="train",
                frames_per_tile=16384):
    """Pallas equivalent of VoiceActivityDetactorCNNAE.forward (metrics dict)."""
    feats = jnp.asarray(feats)
    B, T, Din = feats.shape
    H = params["w1"].shape[1]

    # Frame-packing factor: P*Din = 128 fills the MXU contraction dim (P=4 for Din=32).
    P = 128 // Din if (Din <= 128 and 128 % Din == 0) else 1
    T_pad = _round_up(T, 8)
    if T_pad % P:
        T_pad = _round_up(T_pad, P)
    Tq = T_pad // P

    # ~16K frames per grid step (~10 MiB working set incl. double buffering and
    # f32 intermediates) -> fits the explicit 48 MiB VMEM limit with headroom
    # even on v7x's 64 MiB; >= 2 disjoint "parallel" tiles for the v7x megacore.
    s_tile, n_tiles = _choose_tiles(B, T_pad, frames_per_tile)
    B_pad = s_tile * n_tiles
    rows = n_tiles * Tq * s_tile
    PD, PH = P * Din, P * H

    # --- inputs: pad, cast to bf16, pack P consecutive frames per row, order rows
    # group-major within each tile (one fused XLA copy at half the f32 footprint;
    # production callers should feed bf16 / pre-packed features to avoid it). ---
    x = feats.astype(jnp.bfloat16)
    x = jnp.pad(x, ((0, B_pad - B), (0, T_pad - T), (0, 0)))
    x = x.reshape(B_pad, Tq, PD)
    x = x.reshape(n_tiles, s_tile, Tq, PD).transpose(0, 2, 1, 3)
    x_rows = x.reshape(rows, PD)

    y = jnp.pad(jnp.asarray(vad_labels).astype(jnp.float32),
                ((0, B_pad - B), (0, T_pad - T)))
    lens = jnp.pad(jnp.asarray(input_lengths).astype(jnp.int32), (0, B_pad - B))
    mask = (jnp.arange(T_pad, dtype=jnp.int32)[None, :]
            < lens[:, None]).astype(jnp.float32)              # (B_pad, T_pad)

    # --- block-diagonal weights: P independent frames share one K=PD matmul ---
    eye_p = jnp.eye(P, dtype=jnp.float32)
    w1_bd = jnp.kron(eye_p, params["w1"]).astype(jnp.bfloat16)              # (PD, PH)
    w2_bd = jnp.kron(eye_p, params["w2"]).astype(jnp.bfloat16)              # (PH, PH)
    w3_hd = jnp.kron(eye_p, params["w3"].reshape(H, 1)).astype(jnp.bfloat16)  # (PH, P)
    b1_t = jnp.tile(params["b1"].astype(jnp.float32), (1, P))
    b2_t = jnp.tile(params["b2"].astype(jnp.float32), (1, P))
    b3 = params["b3"].astype(jnp.float32).reshape(1, 1)

    grid_spec = pltpu.PrefetchScalarGridSpec(
        num_scalar_prefetch=0,
        grid=(n_tiles,),
        in_specs=[
            pl.BlockSpec((Tq * s_tile, PD), lambda i: (i, 0)),
            pl.BlockSpec((s_tile, T_pad), lambda i: (i, 0)),
            pl.BlockSpec((s_tile, T_pad), lambda i: (i, 0)),
            pl.BlockSpec((PD, PH), lambda i: (0, 0)),   # weights: constant index
            pl.BlockSpec((1, PH), lambda i: (0, 0)),    # maps -> VMEM resident
            pl.BlockSpec((PH, PH), lambda i: (0, 0)),
            pl.BlockSpec((1, PH), lambda i: (0, 0)),
            pl.BlockSpec((PH, P), lambda i: (0, 0)),
            pl.BlockSpec(memory_space=pltpu.MemorySpace.SMEM),   # b3 scalar
        ],
        out_specs=pl.BlockSpec((s_tile, 128), lambda i: (i, 0)),
        scratch_shapes=[pltpu.VMEM((s_tile, T_pad), jnp.float32)],
    )

    per_sample = pl.pallas_call(
        _vad_kernel,
        out_shape=jax.ShapeDtypeStruct((B_pad, 128), jnp.float32),
        grid_spec=grid_spec,
        compiler_params=pltpu.CompilerParams(
            dimension_semantics=("parallel",),          # disjoint blocks per step
            vmem_limit_bytes=48 * 1024 * 1024),
    )(x_rows, y, mask, w1_bd, b1_t, w2_bd, b2_t, w3_hd, b3)

    # Macro average over the real batch (tiny epilogue on a (B, 5) table).
    mean = jnp.mean(per_sample[:B, :5], axis=0)
    return {
        f"{split}_loss": mean[0],
        f"{split}_acc": mean[1],
        f"{split}_precision": mean[2],
        f"{split}_recall": mean[3],
        f"{split}_f1": mean[4],
    }


def vad_forward_ref(params, feats, vad_labels, input_lengths, split="train"):
    """Pure-JAX reference mirroring the PyTorch per-sample loop (bf16 matmuls)."""
    B, T, Din = feats.shape
    H = params["w1"].shape[1]
    x2 = feats.reshape(B * T, Din).astype(jnp.bfloat16)
    w1 = params["w1"].astype(jnp.bfloat16)
    w2 = params["w2"].astype(jnp.bfloat16)
    w3 = params["w3"].astype(jnp.bfloat16)
    h1 = jnp.maximum(
        jnp.dot(x2, w1, preferred_element_type=jnp.float32) + params["b1"], 0.0)
    h2 = jnp.maximum(
        jnp.dot(h1.astype(jnp.bfloat16), w2, preferred_element_type=jnp.float32)
        + params["b2"], 0.0)
    z = (jnp.dot(h2.astype(jnp.bfloat16), w3.reshape(H, 1),
                 preferred_element_type=jnp.float32)[:, 0]
         + params["b3"][0, 0]).reshape(B, T)
    labels = jnp.asarray(vad_labels).astype(jnp.float32)

    loss_s = acc_s = prec_s = rec_s = f1_s = 0.0
    for i in range(B):
        L = int(input_lengths[i])
        zi, yi = z[i, :L], labels[i, :L]
        loss_t = jnp.maximum(zi, 0.0) - zi * yi + jnp.log(1.0 + jnp.exp(-jnp.abs(zi)))
        loss_s += jnp.mean(loss_t)
        pred = (zi > 0.0).astype(jnp.float32)
        acc_s += jnp.mean((pred == yi).astype(jnp.float32))
        tp = jnp.sum(pred * yi)
        fp = jnp.sum(pred * (1 - yi))
        fn = jnp.sum((1 - pred) * yi)
        p = jnp.where(tp + fp > 0, tp / jnp.maximum(tp + fp, 1e-12), 0.0)
        r = jnp.where(tp + fn > 0, tp / jnp.maximum(tp + fn, 1e-12), 0.0)
        prec_s += p
        rec_s += r
        f1_s += jnp.where(p + r > 0, 2 * p * r / jnp.maximum(p + r, 1e-12), 0.0)
    return {
        f"{split}_loss": loss_s / B,
        f"{split}_acc": acc_s / B,
        f"{split}_precision": prec_s / B,
        f"{split}_recall": rec_s / B,
        f"{split}_f1": f1_s / B,
    }


def init_params(key, d_in, hidden):
    k1, k2, k3, k4 = jax.random.split(key, 4)
    s1 = 1.0 / np.sqrt(d_in)
    s2 = 1.0 / np.sqrt(hidden)
    return {
        "w1": jax.random.normal(k1, (d_in, hidden), jnp.float32) * s1,
        "b1": jnp.zeros((1, hidden), jnp.float32),
        "w2": jax.random.normal(k2, (hidden, hidden), jnp.float32) * s2,
        "b2": jnp.zeros((1, hidden), jnp.float32),
        "w3": jax.random.normal(k3, (1, hidden), jnp.float32) * s2,
        "b3": jax.random.normal(k4, (1, 1), jnp.float32) * 0.1,
    }


if __name__ == "__main__":
    B, T, D_IN, HIDDEN = 2, 8, 32, 32          # vad_input_dim=32, vad_hidden_dim=32

    key = jax.random.PRNGKey(0)
    kp, kf, kl = jax.random.split(key, 3)
    params = init_params(kp, D_IN, HIDDEN)
    feats = jax.random.normal(kf, (B, T, D_IN), jnp.float32)
    vad_labels = jax.random.bernoulli(kl, 0.5, (B, T)).astype(jnp.float32)
    input_lengths = jnp.array([T, T - 3], dtype=jnp.int32)

    outputs = vad_forward(params, feats, vad_labels, input_lengths, split="train")
    outputs = jax.block_until_ready(outputs)

    ref = vad_forward_ref(params, feats, vad_labels, input_lengths, split="train")
    for k in outputs:
        np.testing.assert_allclose(np.asarray(outputs[k]), np.asarray(ref[k]),
                                   rtol=2e-3, atol=2e-3)

    print("KERNEL_OK")
</pallas_src>

<mosaic_0001>
module attributes {stable_mosaic.version = 11 : i64} {
  func.func @_vad_kernel(%arg0: i32, %arg1: memref<16x128xbf16, #tpu.memory_space<vmem>>, %arg2: memref<8x8xf32, #tpu.memory_space<vmem>>, %arg3: memref<8x8xf32, #tpu.memory_space<vmem>>, %arg4: memref<128x128xbf16, #tpu.memory_space<vmem>>, %arg5: memref<1x128xf32, #tpu.memory_space<vmem>>, %arg6: memref<128x128xbf16, #tpu.memory_space<vmem>>, %arg7: memref<1x128xf32, #tpu.memory_space<vmem>>, %arg8: memref<128x4xbf16, #tpu.memory_space<vmem>>, %arg9: memref<1x1xf32, #tpu.memory_space<smem>>, %arg10: memref<8x128xf32, #tpu.memory_space<vmem>>, %arg11: memref<8x8xf32, #tpu.memory_space<vmem>>) attributes {dimension_semantics = [#tpu.dimension_semantics<parallel>], iteration_bounds = array<i64: 2>, scalar_prefetch = 0 : i64, scratch_operands = 1 : i64, tpu.core_type = #tpu.core_type<tc>, window_params = [{transform_indices = @transform_0, window_bounds = array<i64: 16, 128>}, {transform_indices = @transform_1, window_bounds = array<i64: 8, 8>}, {transform_indices = @transform_2, window_bounds = array<i64: 8, 8>}, {pipeline_mode = #tpu.pipeline_mode<synchronous>, transform_indices = @transform_3, window_bounds = array<i64: 128, 128>}, {pipeline_mode = #tpu.pipeline_mode<synchronous>, transform_indices = @transform_4, window_bounds = array<i64: 1, 128>}, {pipeline_mode = #tpu.pipeline_mode<synchronous>, transform_indices = @transform_5, window_bounds = array<i64: 128, 128>}, {pipeline_mode = #tpu.pipeline_mode<synchronous>, transform_indices = @transform_6, window_bounds = array<i64: 1, 128>}, {pipeline_mode = #tpu.pipeline_mode<synchronous>, transform_indices = @transform_7, window_bounds = array<i64: 128, 4>}, {transform_indices = @transform_8, window_bounds = array<i64: 1, 1>}, {transform_indices = @transform_9, window_bounds = array<i64: 8, 128>}]} {
    %c0 = arith.constant 0 : index
    %c0_0 = arith.constant 0 : index
    %0 = vector.load %arg1[%c0, %c0_0] : memref<16x128xbf16, #tpu.memory_space<vmem>>, vector<16x128xbf16>
    %c0_1 = arith.constant 0 : index
    %c0_2 = arith.constant 0 : index
    %1 = vector.load %arg4[%c0_1, %c0_2] : memref<128x128xbf16, #tpu.memory_space<vmem>>, vector<128x128xbf16>
    %cst = arith.constant dense<0.000000e+00> : vector<16x128xf32>
    %2 = tpu.matmul %0, %1, %cst {dimension_numbers = #tpu.dot_dimension_numbers<[1], [0], [0], [1], [0, 0, 1, 1], [], []>} : vector<16x128xbf16>, vector<128x128xbf16>, vector<16x128xf32> -> vector<16x128xf32>
    %c0_3 = arith.constant 0 : index
    %c0_4 = arith.constant 0 : index
    %3 = vector.load %arg5[%c0_3, %c0_4] : memref<1x128xf32, #tpu.memory_space<vmem>>, vector<1x128xf32>
    %4 = vector.broadcast %3 : vector<1x128xf32> to vector<16x128xf32>
    %5 = arith.addf %2, %4 : vector<16x128xf32>
    %cst_5 = arith.constant 0.000000e+00 : f32
    %6 = vector.broadcast %cst_5 : f32 to vector<16x128xf32>
    %7 = arith.maximumf %5, %6 : vector<16x128xf32>
    %8 = arith.truncf %7 : vector<16x128xf32> to vector<16x128xbf16>
    %c0_6 = arith.constant 0 : index
    %c0_7 = arith.constant 0 : index
    %9 = vector.load %arg6[%c0_6, %c0_7] : memref<128x128xbf16, #tpu.memory_space<vmem>>, vector<128x128xbf16>
    %cst_8 = arith.constant dense<0.000000e+00> : vector<16x128xf32>
    %10 = tpu.matmul %8, %9, %cst_8 {dimension_numbers = #tpu.dot_dimension_numbers<[1], [0], [0], [1], [0, 0, 1, 1], [], []>} : vector<16x128xbf16>, vector<128x128xbf16>, vector<16x128xf32> -> vector<16x128xf32>
    %c0_9 = arith.constant 0 : index
    %c0_10 = arith.constant 0 : index
    %11 = vector.load %arg7[%c0_9, %c0_10] : memref<1x128xf32, #tpu.memory_space<vmem>>, vector<1x128xf32>
    %12 = vector.broadcast %11 : vector<1x128xf32> to vector<16x128xf32>
    %13 = arith.addf %10, %12 : vector<16x128xf32>
    %cst_11 = arith.constant 0.000000e+00 : f32
    %14 = vector.broadcast %cst_11 : f32 to vector<16x128xf32>
    %15 = arith.maximumf %13, %14 : vector<16x128xf32>
    %16 = arith.truncf %15 : vector<16x128xf32> to vector<16x128xbf16>
    %c0_12 = arith.constant 0 : index
    %c0_13 = arith.constant 0 : index
    %17 = vector.load %arg8[%c0_12, %c0_13] : memref<128x4xbf16, #tpu.memory_space<vmem>>, vector<128x4xbf16>
    %cst_14 = arith.constant dense<0.000000e+00> : vector<16x4xf32>
    %18 = tpu.matmul %16, %17, %cst_14 {dimension_numbers = #tpu.dot_dimension_numbers<[1], [0], [0], [1], [0, 0, 1, 1], [], []>} : vector<16x128xbf16>, vector<128x4xbf16>, vector<16x4xf32> -> vector<16x4xf32>
    %19 = vector.extract_strided_slice %18 {offsets = [0, 0], sizes = [8, 4], strides = [1, 1]} : vector<16x4xf32> to vector<8x4xf32>
    %c0_15 = arith.constant 0 : index
    %c0_16 = arith.constant 0 : index
    %20 = vector.load %arg11[%c0_15, %c0_16] : memref<8x8xf32, #tpu.memory_space<vmem>>, vector<8x4xf32>
    tpu.vector_store %arg11[%c0_15, %c0_16], %19 {strides = array<i32>} : memref<8x8xf32, #tpu.memory_space<vmem>>, vector<8x4xf32>,
    %21 = vector.extract_strided_slice %18 {offsets = [8, 0], sizes = [8, 4], strides = [1, 1]} : vector<16x4xf32> to vector<8x4xf32>
    %c0_17 = arith.constant 0 : index
    %c4 = arith.constant 4 : index
    %22 = vector.load %arg11[%c0_17, %c4] : memref<8x8xf32, #tpu.memory_space<vmem>>, vector<8x4xf32>
    tpu.vector_store %arg11[%c0_17, %c4], %21 {strides = array<i32>} : memref<8x8xf32, #tpu.memory_space<vmem>>, vector<8x4xf32>,
    %c0_18 = arith.constant 0 : index
    %c0_19 = arith.constant 0 : index
    %23 = vector.load %arg11[%c0_18, %c0_19] : memref<8x8xf32, #tpu.memory_space<vmem>>, vector<8x8xf32>
    %c0_20 = arith.constant 0 : index
    %c0_21 = arith.constant 0 : index
    %24 = memref.load %arg9[%c0_20, %c0_21] : memref<1x1xf32, #tpu.memory_space<smem>>
    %25 = vector.broadcast %24 : f32 to vector<8x8xf32>
    %26 = arith.addf %23, %25 : vector<8x8xf32>
    %c0_22 = arith.constant 0 : index
    %c0_23 = arith.constant 0 : index
    %27 = vector.load %arg2[%c0_22, %c0_23] : memref<8x8xf32, #tpu.memory_space<vmem>>, vector<8x8xf32>
    %c0_24 = arith.constant 0 : index
    %c0_25 = arith.constant 0 : index
    %28 = vector.load %arg3[%c0_24, %c0_25] : memref<8x8xf32, #tpu.memory_space<vmem>>, vector<8x8xf32>
    %cst_26 = arith.constant 0.000000e+00 : f32
    %29 = vector.broadcast %cst_26 : f32 to vector<8x8xf32>
    %30 = arith.maximumf %26, %29 : vector<8x8xf32>
    %31 = arith.mulf %26, %27 : vector<8x8xf32>
    %32 = arith.subf %30, %31 : vector<8x8xf32>
    %33 = math.absf %26 : vector<8x8xf32>
    %cst_27 = arith.constant 0.000000e+00 : f32
    %34 = vector.broadcast %cst_27 : f32 to vector<8x8xf32>
    %35 = arith.subf %34, %33 : vector<8x8xf32>
    %36 = math.exp %35 : vector<8x8xf32>
    %cst_28 = arith.constant 1.000000e+00 : f32
    %37 = vector.broadcast %cst_28 : f32 to vector<8x8xf32>
    %38 = arith.addf %37, %36 : vector<8x8xf32>
    %39 = math.log %38 : vector<8x8xf32>
    %40 = arith.addf %32, %39 : vector<8x8xf32>
    %41 = arith.mulf %40, %28 : vector<8x8xf32>
    %cst_29 = arith.constant 0.000000e+00 : f32
    %42 = vector.broadcast %cst_29 : f32 to vector<8x8xf32>
    %43 = arith.cmpf ogt, %26, %42 : vector<8x8xf32>
    %44 = arith.extui %43 : vector<8x8xi1> to vector<8x8xi32>
    %45 = arith.sitofp %44 : vector<8x8xi32> to vector<8x8xf32>
    %46 = arith.cmpf oeq, %45, %27 : vector<8x8xf32>
    %47 = arith.extui %46 : vector<8x8xi1> to vector<8x8xi32>
    %48 = arith.sitofp %47 : vector<8x8xi32> to vector<8x8xf32>
    %49 = arith.mulf %48, %28 : vector<8x8xf32>
    %50 = arith.mulf %45, %27 : vector<8x8xf32>
    %51 = arith.mulf %50, %28 : vector<8x8xf32>
    %cst_30 = arith.constant 1.000000e+00 : f32
    %52 = vector.broadcast %cst_30 : f32 to vector<8x8xf32>
    %53 = arith.subf %52, %27 : vector<8x8xf32>
    %54 = arith.mulf %45, %53 : vector<8x8xf32>
    %55 = arith.mulf %54, %28 : vector<8x8xf32>
    %cst_31 = arith.constant 1.000000e+00 : f32
    %56 = vector.broadcast %cst_31 : f32 to vector<8x8xf32>
    %57 = arith.subf %56, %45 : vector<8x8xf32>
    %58 = arith.mulf %57, %27 : vector<8x8xf32>
    %59 = arith.mulf %58, %28 : vector<8x8xf32>
    %cst_32 = arith.constant dense<0.000000e+00> : vector<8xf32>
    %60 = vector.multi_reduction <add>, %41, %cst_32 [1] : vector<8x8xf32> to vector<8xf32>
    %61 = vector.shape_cast %60 : vector<8xf32> to vector<8x1xf32>
    %cst_33 = arith.constant dense<0.000000e+00> : vector<8xf32>
    %62 = vector.multi_reduction <add>, %49, %cst_33 [1] : vector<8x8xf32> to vector<8xf32>
    %63 = vector.shape_cast %62 : vector<8xf32> to vector<8x1xf32>
    %cst_34 = arith.constant dense<0.000000e+00> : vector<8xf32>
    %64 = vector.multi_reduction <add>, %51, %cst_34 [1] : vector<8x8xf32> to vector<8xf32>
    %65 = vector.shape_cast %64 : vector<8xf32> to vector<8x1xf32>
    %cst_35 = arith.constant dense<0.000000e+00> : vector<8xf32>
    %66 = vector.multi_reduction <add>, %55, %cst_35 [1] : vector<8x8xf32> to vector<8xf32>
    %67 = vector.shape_cast %66 : vector<8xf32> to vector<8x1xf32>
    %cst_36 = arith.constant dense<0.000000e+00> : vector<8xf32>
    %68 = vector.multi_reduction <add>, %59, %cst_36 [1] : vector<8x8xf32> to vector<8xf32>
    %69 = vector.shape_cast %68 : vector<8xf32> to vector<8x1xf32>
    %cst_37 = arith.constant dense<0.000000e+00> : vector<8xf32>
    %70 = vector.multi_reduction <add>, %28, %cst_37 [1] : vector<8x8xf32> to vector<8xf32>
    %71 = vector.shape_cast %70 : vector<8xf32> to vector<8x1xf32>
    %cst_38 = arith.constant 1.000000e+00 : f32
    %72 = vector.broadcast %cst_38 : f32 to vector<8x1xf32>
    %73 = arith.maximumf %71, %72 : vector<8x1xf32>
    %74 = arith.divf %61, %73 : vector<8x1xf32>
    %75 = arith.divf %63, %73 : vector<8x1xf32>
    %76 = arith.addf %65, %67 : vector<8x1xf32>
    %cst_39 = arith.constant 0.000000e+00 : f32
    %77 = vector.broadcast %cst_39 : f32 to vector<8x1xf32>
    %78 = arith.cmpf ogt, %76, %77 : vector<8x1xf32>
    %79 = arith.addf %65, %67 : vector<8x1xf32>
    %cst_40 = arith.constant 9.99999996E-13 : f32
    %80 = vector.broadcast %cst_40 : f32 to vector<8x1xf32>
    %81 = arith.maximumf %79, %80 : vector<8x1xf32>
    %82 = arith.divf %65, %81 : vector<8x1xf32>
    %cst_41 = arith.constant 0.000000e+00 : f32
    %83 = vector.broadcast %cst_41 : f32 to vector<8x1xf32>
    %84 = arith.select %78, %82, %83 : vector<8x1xi1>, vector<8x1xf32>
    %85 = arith.addf %65, %69 : vector<8x1xf32>
    %cst_42 = arith.constant 0.000000e+00 : f32
    %86 = vector.broadcast %cst_42 : f32 to vector<8x1xf32>
    %87 = arith.cmpf ogt, %85, %86 : vector<8x1xf32>
    %88 = arith.addf %65, %69 : vector<8x1xf32>
    %cst_43 = arith.constant 9.99999996E-13 : f32
    %89 = vector.broadcast %cst_43 : f32 to vector<8x1xf32>
    %90 = arith.maximumf %88, %89 : vector<8x1xf32>
    %91 = arith.divf %65, %90 : vector<8x1xf32>
    %cst_44 = arith.constant 0.000000e+00 : f32
    %92 = vector.broadcast %cst_44 : f32 to vector<8x1xf32>
    %93 = arith.select %87, %91, %92 : vector<8x1xi1>, vector<8x1xf32>
    %94 = arith.addf %84, %93 : vector<8x1xf32>
    %cst_45 = arith.constant 0.000000e+00 : f32
    %95 = vector.broadcast %cst_45 : f32 to vector<8x1xf32>
    %96 = arith.cmpf ogt, %94, %95 : vector<8x1xf32>
    %cst_46 = arith.constant 2.000000e+00 : f32
    %97 = vector.broadcast %cst_46 : f32 to vector<8x1xf32>
    %98 = arith.mulf %97, %84 : vector<8x1xf32>
    %99 = arith.mulf %98, %93 : vector<8x1xf32>
    %100 = arith.addf %84, %93 : vector<8x1xf32>
    %cst_47 = arith.constant 9.99999996E-13 : f32
    %101 = vector.broadcast %cst_47 : f32 to vector<8x1xf32>
    %102 = arith.maximumf %100, %101 : vector<8x1xf32>
    %103 = arith.divf %99, %102 : vector<8x1xf32>
    %cst_48 = arith.constant 0.000000e+00 : f32
    %104 = vector.broadcast %cst_48 : f32 to vector<8x1xf32>
    %105 = arith.select %96, %103, %104 : vector<8x1xi1>, vector<8x1xf32>
    %cst_49 = arith.constant 0.000000e+00 : f32
    %106 = vector.broadcast %cst_49 : f32 to vector<8x128xf32>
    %c0_50 = arith.constant 0 : index
    %c0_51 = arith.constant 0 : index
    %107 = vector.load %arg10[%c0_50, %c0_51] : memref<8x128xf32, #tpu.memory_space<vmem>>, vector<8x128xf32>
    tpu.vector_store %arg10[%c0_50, %c0_51], %106 {strides = array<i32>} : memref<8x128xf32, #tpu.memory_space<vmem>>, vector<8x128xf32>,
    %c0_52 = arith.constant 0 : index
    %c0_53 = arith.constant 0 : index
    %108 = vector.load %arg10[%c0_52, %c0_53] : memref<8x128xf32, #tpu.memory_space<vmem>>, vector<8x1xf32>
    tpu.vector_store %arg10[%c0_52, %c0_53], %74 {strides = array<i32>} : memref<8x128xf32, #tpu.memory_space<vmem>>, vector<8x1xf32>,
    %c0_54 = arith.constant 0 : index
    %c1 = arith.constant 1 : index
    %109 = vector.load %arg10[%c0_54, %c1] : memref<8x128xf32, #tpu.memory_space<vmem>>, vector<8x1xf32>
    tpu.vector_store %arg10[%c0_54, %c1], %75 {strides = array<i32>} : memref<8x128xf32, #tpu.memory_space<vmem>>, vector<8x1xf32>,
    %c0_55 = arith.constant 0 : index
    %c2 = arith.constant 2 : index
    %110 = vector.load %arg10[%c0_55, %c2] : memref<8x128xf32, #tpu.memory_space<vmem>>, vector<8x1xf32>
    tpu.vector_store %arg10[%c0_55, %c2], %84 {strides = array<i32>} : memref<8x128xf32, #tpu.memory_space<vmem>>, vector<8x1xf32>,
    %c0_56 = arith.constant 0 : index
    %c3 = arith.constant 3 : index
    %111 = vector.load %arg10[%c0_56, %c3] : memref<8x128xf32, #tpu.memory_space<vmem>>, vector<8x1xf32>
    tpu.vector_store %arg10[%c0_56, %c3], %93 {strides = array<i32>} : memref<8x128xf32, #tpu.memory_space<vmem>>, vector<8x1xf32>,
    %c0_57 = arith.constant 0 : index
    %c4_58 = arith.constant 4 : index
    %112 = vector.load %arg10[%c0_57, %c4_58] : memref<8x128xf32, #tpu.memory_space<vmem>>, vector<8x1xf32>
    tpu.vector_store %arg10[%c0_57, %c4_58], %105 {strides = array<i32>} : memref<8x128xf32, #tpu.memory_space<vmem>>, vector<8x1xf32>,
    return
  }
  func.func @transform_0(%arg0: i32) -> (i32, i32) {
    %c0_i32 = arith.constant 0 : i32
    %c0_i32_0 = arith.constant 0 : i32
    return %arg0, %c0_i32 : i32, i32
  }
  func.func @transform_1(%arg0: i32) -> (i32, i32) {
    %c0_i32 = arith.constant 0 : i32
    %c0_i32_0 = arith.constant 0 : i32
    return %arg0, %c0_i32 : i32, i32
  }
  func.func @transform_2(%arg0: i32) -> (i32, i32) {
    %c0_i32 = arith.constant 0 : i32
    %c0_i32_0 = arith.constant 0 : i32
    return %arg0, %c0_i32 : i32, i32
  }
  func.func @transform_3(%arg0: i32) -> (i32, i32) {
    %c0_i32 = arith.constant 0 : i32
    %c0_i32_0 = arith.constant 0 : i32
    %c0_i32_1 = arith.constant 0 : i32
    return %c0_i32, %c0_i32_0 : i32, i32
  }
  func.func @transform_4(%arg0: i32) -> (i32, i32) {
    %c0_i32 = arith.constant 0 : i32
    %c0_i32_0 = arith.constant 0 : i32
    %c0_i32_1 = arith.constant 0 : i32
    return %c0_i32, %c0_i32_0 : i32, i32
  }
  func.func @transform_5(%arg0: i32) -> (i32, i32) {
    %c0_i32 = arith.constant 0 : i32
    %c0_i32_0 = arith.constant 0 : i32
    %c0_i32_1 = arith.constant 0 : i32
    return %c0_i32, %c0_i32_0 : i32, i32
  }
  func.func @transform_6(%arg0: i32) -> (i32, i32) {
    %c0_i32 = arith.constant 0 : i32
    %c0_i32_0 = arith.constant 0 : i32
    %c0_i32_1 = arith.constant 0 : i32
    return %c0_i32, %c0_i32_0 : i32, i32
  }
  func.func @transform_7(%arg0: i32) -> (i32, i32) {
    %c0_i32 = arith.constant 0 : i32
    %c0_i32_0 = arith.constant 0 : i32
    %c0_i32_1 = arith.constant 0 : i32
    return %c0_i32, %c0_i32_0 : i32, i32
  }
  func.func @transform_8(%arg0: i32) -> (i32, i32) {
    %c0_i32 = arith.constant 0 : i32
    %c0_i32_0 = arith.constant 0 : i32
    %c0_i32_1 = arith.constant 0 : i32
    return %c0_i32, %c0_i32_0 : i32, i32
  }
  func.func @transform_9(%arg0: i32) -> (i32, i32) {
    %c0_i32 = arith.constant 0 : i32
    %c0_i32_0 = arith.constant 0 : i32
    return %arg0, %c0_i32 : i32, i32
  }
}

</mosaic_0001>

<llo_original>
// kernel: tpu_custom_call.1
$region0: #{tpu_custom_call.1}
  #allocation0 [shape = 'u32[]', space=smem, size = 0x4, offset = 0x4, fixed_abs, tag = 'smem constant byte address 0x4 - core index']
  #allocation1 [shape = 'u32[144,128]{1,0:T(1,128)}', space=vmem, size = 0x12000, scoped, tag = 'internal scratch']
  #allocation2 [shape = 'f32[8,8]{1,0:T(8,128)}', space=vmem, size = 0x1000, scoped, tag = 'scratch operand']
  #allocation3 [shape = 'f32[1,1]{1,0:T(1,128)S(6)}', space=smem, size = 0x200, scoped, tag = 'scoped memory for tpu_custom_call.1']
  %s0 = inlined_call_operand.vmem [shape: bf16[32,128], index: 0, kind: input, shape index: {}]
  %s1 = inlined_call_operand.vmem [shape: f32[16,8], index: 1, kind: input, shape index: {}]
  %s2 = inlined_call_operand.vmem [shape: f32[16,8], index: 2, kind: input, shape index: {}]
  %s3 = inlined_call_operand.vmem [shape: bf16[128,128], index: 3, kind: input, shape index: {}]
  %s4 = inlined_call_operand.vmem [shape: f32[1,128], index: 4, kind: input, shape index: {}]
  %s5 = inlined_call_operand.hbm [shape: bf16[128,128], index: 5, kind: input, shape index: {}]
  %s6 = inlined_call_operand.vmem [shape: f32[1,128], index: 6, kind: input, shape index: {}]
  %s7 = inlined_call_operand.vmem [shape: bf16[128,4], index: 7, kind: input, shape index: {}]
  %s8 = inlined_call_operand.<no memory space> [shape: f32[1,1], index: 8, kind: input, shape index: {}]
  %s9 = inlined_call_operand.hbm [shape: f32[16,128], index: 9, kind: output, shape index: {}]
  %s10 = sld [smem:[#allocation0]]
  $region73: #{tpu_custom_call.1} parent=0
    _
  %s12 = ssub.s32 1, %s10
  %s13 = scalar_select 0, %s12, %s10
  %14 = sst [smem:[#allocation3]] %s8
  $region1: #{tpu_custom_call.1} parent=0
    #allocation4 [shape = 'u8[32768]{0}', space=vmem, size = 0x8000, scoped, tag = 'input window, operand 5, single buffered']
    #allocation5 [shape = 's32[2]{0}', space=sflag, size = 0x8, scoped, tag = 'scoped memory for tpu_custom_call.1']
    #allocation6 [shape = 's32[2]{0}', space=sflag, size = 0x8, scoped, tag = 'scoped memory for tpu_custom_call.1']
    #allocation7 [shape = 'u8[8192]{0}', space=vmem, size = 0x2000, scoped, tag = 'output window, operand 0']
    %15 = vsyncpa [#allocation5], 0
    %16 = vsyncpa [#allocation6], 0
    %s17 = scalar_lea.sflag [#allocation6], 1
    %18 = vsyncpa %s17, 0
    loop: start=0, step=1, limit=4
    $region2: #{tpu_custom_call.1} parent=1 // loop_pre_header
      _
    $region3: #{tpu_custom_call.1} parent=1 // loop_header
      %s20 = sphi 0, %s24
      %p21 = scmp.ge.s32.totalorder %s20, 4
      %s30 = sphi 0, %s32
      %s33 = sphi 0, %s30
      %s34 = sphi 0, %s33
      %s50 = sphi 0, %s34
      %s56 = sphi 0, %s58
      %s59 = sphi 0, %s56
      %s60 = sphi 0, %s59
      %s76 = sphi 0, %s60
      %s82 = sphi 0, %s84
      %s85 = sphi 0, %s82
      %s86 = sphi 0, %s85
      %s102 = sphi 0, %s86
      %s106 = sphi 0, %s106
      %s108 = sphi 0, %s106
      %s109 = sphi 0, %s108
      %s123 = sphi 0, %s109
      %s127 = sphi 0, %s127
      %s129 = sphi 0, %s127
      %s130 = sphi 0, %s129
      %s144 = sphi 0, %s130
      %s148 = sphi 0, %s148
      %s150 = sphi 0, %s148
      %s151 = sphi 0, %s150
      %s165 = sphi 0, %s151
      %s169 = sphi 0, %s169
      %s171 = sphi 0, %s169
      %s172 = sphi 0, %s171
      %s186 = sphi 0, %s172
      %s190 = sphi 0, %s190
      %s192 = sphi 0, %s190
      %s193 = sphi 0, %s192
      %s207 = sphi 0, %s193
      %s211 = sphi 0, %s211
      %s213 = sphi 0, %s211
      %s214 = sphi 0, %s213
      %s228 = sphi 0, %s214
      %s234 = sphi 0, %s236
      %s237 = sphi 0, %s234
      %s238 = sphi 0, %s237
      %s254 = sphi 0, %s238
    $region4: #{tpu_custom_call.1} parent=1 // loop_header_branch
      %23 = sbr.rel (%p21) target = $region8
    $region5: #{tpu_custom_call.1} parent=1 // loop_body
      %s25 = ssub.s32 %s20, 1
      %s26 = ssub.s32 %s20, 2
      %s27 = sadd.s32 %s20, 1
      %s28 = ssub.s32 %s20, %s27
      %p29 = scmp.eq.s32.totalorder %s28, 0
      %s31 = sadd.s32 %s30, 1
      %s32 = scalar_select %p29, %s30, %s31
      %p35 = pneg %p29
      %p36 = scmp.eq.s32.totalorder %s20, 1
      %p37 = por %p35, %p36
      %p38 = scmp.ne.s32.totalorder %s30, %s33
      %p39 = scmp.eq.s32.totalorder %s20, 0
      %p40 = por %p38, %p39
      %p41 = scmp.ne.s32.totalorder %s30, %s33
      %p42 = scmp.eq.s32.totalorder %s25, 1
      %p43 = por %p41, %p42
      %p44 = scmp.ne.s32.totalorder %s33, %s34
      %p45 = scmp.eq.s32.totalorder %s25, 0
      %p46 = por %p44, %p45
      %p47 = scmp.ne.s32.totalorder %s33, %s34
      %p48 = scmp.eq.s32.totalorder %s26, 1
      %p49 = por %p47, %p48
      %p51 = scmp.ne.s32.totalorder %s34, %s50
      %p52 = scmp.eq.s32.totalorder %s26, 0
      %p53 = por %p51, %p52
      %s54 = ssub.s32 %s20, %s27
      %p55 = scmp.eq.s32.totalorder %s54, 0
      %s57 = sadd.s32 %s56, 1
      %s58 = scalar_select %p55, %s56, %s57
      %p61 = pneg %p55
      %p62 = scmp.eq.s32.totalorder %s20, 1
      %p63 = por %p61, %p62
      %p64 = scmp.ne.s32.totalorder %s56, %s59
      %p65 = scmp.eq.s32.totalorder %s20, 0
      %p66 = por %p64, %p65
      %p67 = scmp.ne.s32.totalorder %s56, %s59
      %p68 = scmp.eq.s32.totalorder %s25, 1
      %p69 = por %p67, %p68
      %p70 = scmp.ne.s32.totalorder %s59, %s60
      %p71 = scmp.eq.s32.totalorder %s25, 0
      %p72 = por %p70, %p71
      %p73 = scmp.ne.s32.totalorder %s59, %s60
      %p74 = scmp.eq.s32.totalorder %s26, 1
      %p75 = por %p73, %p74
      %p77 = scmp.ne.s32.totalorder %s60, %s76
      %p78 = scmp.eq.s32.totalorder %s26, 0
      %p79 = por %p77, %p78
      %s80 = ssub.s32 %s20, %s27
      %p81 = scmp.eq.s32.totalorder %s80, 0
      %s83 = sadd.s32 %s82, 1
      %s84 = scalar_select %p81, %s82, %s83
      %p87 = pneg %p81
      %p88 = scmp.eq.s32.totalorder %s20, 1
      %p89 = por %p87, %p88
      %p90 = scmp.ne.s32.totalorder %s82, %s85
      %p91 = scmp.eq.s32.totalorder %s20, 0
      %p92 = por %p90, %p91
      %p93 = scmp.ne.s32.totalorder %s82, %s85
      %p94 = scmp.eq.s32.totalorder %s25, 1
      %p95 = por %p93, %p94
      %p96 = scmp.ne.s32.totalorder %s85, %s86
      %p97 = scmp.eq.s32.totalorder %s25, 0
      %p98 = por %p96, %p97
      %p99 = scmp.ne.s32.totalorder %s85, %s86
      %p100 = scmp.eq.s32.totalorder %s26, 1
      %p101 = por %p99, %p100
      %p103 = scmp.ne.s32.totalorder %s86, %s102
      %p104 = scmp.eq.s32.totalorder %s26, 0
      %p105 = por %p103, %p104
      %s107 = sadd.s32 %s106, 1
      %p110 = scmp.eq.s32.totalorder %s20, 1
      %p111 = scmp.ne.s32.totalorder %s106, %s108
      %p112 = scmp.eq.s32.totalorder %s20, 0
      %p113 = por %p111, %p112
      %p114 = scmp.ne.s32.totalorder %s106, %s108
      %p115 = scmp.eq.s32.totalorder %s25, 1
      %p116 = por %p114, %p115
      %p117 = scmp.ne.s32.totalorder %s108, %s109
      %p118 = scmp.eq.s32.totalorder %s25, 0
      %p119 = por %p117, %p118
      %p120 = scmp.ne.s32.totalorder %s108, %s109
      %p121 = scmp.eq.s32.totalorder %s26, 1
      %p122 = por %p120, %p121
      %p124 = scmp.ne.s32.totalorder %s109, %s123
      %p125 = scmp.eq.s32.totalorder %s26, 0
      %p126 = por %p124, %p125
      %s128 = sadd.s32 %s127, 1
      %p131 = scmp.eq.s32.totalorder %s20, 1
      %p132 = scmp.ne.s32.totalorder %s127, %s129
      %p133 = scmp.eq.s32.totalorder %s20, 0
      %p134 = por %p132, %p133
      %p135 = scmp.ne.s32.totalorder %s127, %s129
      %p136 = scmp.eq.s32.totalorder %s25, 1
      %p137 = por %p135, %p136
      %p138 = scmp.ne.s32.totalorder %s129, %s130
      %p139 = scmp.eq.s32.totalorder %s25, 0
      %p140 = por %p138, %p139
      %p141 = scmp.ne.s32.totalorder %s129, %s130
      %p142 = scmp.eq.s32.totalorder %s26, 1
      %p143 = por %p141, %p142
      %p145 = scmp.ne.s32.totalorder %s130, %s144
      %p146 = scmp.eq.s32.totalorder %s26, 0
      %p147 = por %p145, %p146
      %s149 = sadd.s32 %s148, 1
      %p152 = scmp.eq.s32.totalorder %s20, 1
      %p153 = scmp.ne.s32.totalorder %s148, %s150
      %p154 = scmp.eq.s32.totalorder %s20, 0
      %p155 = por %p153, %p154
      %p156 = scmp.ne.s32.totalorder %s148, %s150
      %p157 = scmp.eq.s32.totalorder %s25, 1
      %p158 = por %p156, %p157
      %p159 = scmp.ne.s32.totalorder %s150, %s151
      %p160 = scmp.eq.s32.totalorder %s25, 0
      %p161 = por %p159, %p160
      %p162 = scmp.ne.s32.totalorder %s150, %s151
      %p163 = scmp.eq.s32.totalorder %s26, 1
      %p164 = por %p162, %p163
      %p166 = scmp.ne.s32.totalorder %s151, %s165
      %p167 = scmp.eq.s32.totalorder %s26, 0
      %p168 = por %p166, %p167
      %s170 = sadd.s32 %s169, 1
      %p173 = scmp.eq.s32.totalorder %s20, 1
      %p174 = scmp.ne.s32.totalorder %s169, %s171
      %p175 = scmp.eq.s32.totalorder %s20, 0
      %p176 = por %p174, %p175
      %p177 = scmp.ne.s32.totalorder %s169, %s171
      %p178 = scmp.eq.s32.totalorder %s25, 1
      %p179 = por %p177, %p178
      %p180 = scmp.ne.s32.totalorder %s171, %s172
      %p181 = scmp.eq.s32.totalorder %s25, 0
      %p182 = por %p180, %p181
      %p183 = scmp.ne.s32.totalorder %s171, %s172
      %p184 = scmp.eq.s32.totalorder %s26, 1
      %p185 = por %p183, %p184
      %p187 = scmp.ne.s32.totalorder %s172, %s186
      %p188 = scmp.eq.s32.totalorder %s26, 0
      %p189 = por %p187, %p188
      %s191 = sadd.s32 %s190, 1
      %p194 = scmp.eq.s32.totalorder %s20, 1
      %p195 = scmp.ne.s32.totalorder %s190, %s192
      %p196 = scmp.eq.s32.totalorder %s20, 0
      %p197 = por %p195, %p196
      %p198 = scmp.ne.s32.totalorder %s190, %s192
      %p199 = scmp.eq.s32.totalorder %s25, 1
      %p200 = por %p198, %p199
      %p201 = scmp.ne.s32.totalorder %s192, %s193
      %p202 = scmp.eq.s32.totalorder %s25, 0
      %p203 = por %p201, %p202
      %p204 = scmp.ne.s32.totalorder %s192, %s193
      %p205 = scmp.eq.s32.totalorder %s26, 1
      %p206 = por %p204, %p205
      %p208 = scmp.ne.s32.totalorder %s193, %s207
      %p209 = scmp.eq.s32.totalorder %s26, 0
      %p210 = por %p208, %p209
      %s212 = sadd.s32 %s211, 1
      %p215 = scmp.eq.s32.totalorder %s20, 1
      %p216 = scmp.ne.s32.totalorder %s211, %s213
      %p217 = scmp.eq.s32.totalorder %s20, 0
      %p218 = por %p216, %p217
      %p219 = scmp.ne.s32.totalorder %s211, %s213
      %p220 = scmp.eq.s32.totalorder %s25, 1
      %p221 = por %p219, %p220
      %p222 = scmp.ne.s32.totalorder %s213, %s214
      %p223 = scmp.eq.s32.totalorder %s25, 0
      %p224 = por %p222, %p223
      %p225 = scmp.ne.s32.totalorder %s213, %s214
      %p226 = scmp.eq.s32.totalorder %s26, 1
      %p227 = por %p225, %p226
      %p229 = scmp.ne.s32.totalorder %s214, %s228
      %p230 = scmp.eq.s32.totalorder %s26, 0
      %p231 = por %p229, %p230
      %s232 = ssub.s32 %s20, %s27
      %p233 = scmp.eq.s32.totalorder %s232, 0
      %s235 = sadd.s32 %s234, 1
      %s236 = scalar_select %p233, %s234, %s235
      %p239 = pneg %p233
      %p240 = scmp.eq.s32.totalorder %s20, 1
      %p241 = por %p239, %p240
      %p242 = scmp.ne.s32.totalorder %s234, %s237
      %p243 = scmp.eq.s32.totalorder %s20, 0
      %p244 = por %p242, %p243
      %p245 = scmp.ne.s32.totalorder %s234, %s237
      %p246 = scmp.eq.s32.totalorder %s25, 1
      %p247 = por %p245, %p246
      %p248 = scmp.ne.s32.totalorder %s237, %s238
      %p249 = scmp.eq.s32.totalorder %s25, 0
      %p250 = por %p248, %p249
      %p251 = scmp.ne.s32.totalorder %s237, %s238
      %p252 = scmp.eq.s32.totalorder %s26, 1
      %p253 = por %p251, %p252
      %p255 = scmp.ne.s32.totalorder %s238, %s254
      %p256 = scmp.eq.s32.totalorder %s26, 0
      %p257 = por %p255, %p256
      %p258 = scmp.le.s32.totalorder 1, %s20
      %p259 = scmp.lt.s32.totalorder %s20, 3
      %p260 = pnand %p258, %p259
      %p261 = pneg %p260
      // Predicated region
      $region9: #{tpu_custom_call.1} parent=5 // pred_check
        _
      $region10: #{tpu_custom_call.1} parent=5 // pred_check_branch
        %263 = sbr.rel (%p260) target = $region12
      $region11: #{tpu_custom_call.1} parent=5 // pred_region
        %s264 = ssub.s32 %s20, 1
        // Predicated region
        $region13: #{tpu_custom_call.1} parent=11 // pred_check
          %p265 = pneg %p119
        $region14: #{tpu_custom_call.1} parent=11 // pred_check_branch
          %267 = sbr.rel (%p265) target = $region16
        $region15: #{tpu_custom_call.1} parent=11 // pred_region
          _
        $region16: #{tpu_custom_call.1} parent=11 // pred_fallthru
          _
        // Predicated region
        $region17: #{tpu_custom_call.1} parent=11 // pred_check
          %p268 = pneg %p140
        $region18: #{tpu_custom_call.1} parent=11 // pred_check_branch
          %270 = sbr.rel (%p268) target = $region20
        $region19: #{tpu_custom_call.1} parent=11 // pred_region
          _
        $region20: #{tpu_custom_call.1} parent=11 // pred_fallthru
          _
        // Predicated region
        $region21: #{tpu_custom_call.1} parent=11 // pred_check
          %p271 = pneg %p161
        $region22: #{tpu_custom_call.1} parent=11 // pred_check_branch
          %273 = sbr.rel (%p271) target = $region24
        $region23: #{tpu_custom_call.1} parent=11 // pred_region
          %s275 = ssub.s32 1024, 1024
          %276 = vsyncadd [#allocation5], %s275
          %s277 = sshll.u32 [#allocation4], 4
          %s278 = int_to_ptr.vmem [resolvable:$true] %s277
          %283 = dma.hbm_to_vmem [thread:$0]  %s5, 1024, %s278, [#allocation5], 64, 64, 4
        $region24: #{tpu_custom_call.1} parent=11 // pred_fallthru
          _
        // Predicated region
        $region25: #{tpu_custom_call.1} parent=11 // pred_check
          %p284 = pneg %p182
        $region26: #{tpu_custom_call.1} parent=11 // pred_check_branch
          %286 = sbr.rel (%p284) target = $region28
        $region27: #{tpu_custom_call.1} parent=11 // pred_region
          _
        $region28: #{tpu_custom_call.1} parent=11 // pred_fallthru
          _
        // Predicated region
        $region29: #{tpu_custom_call.1} parent=11 // pred_check
          %p287 = pneg %p203
        $region30: #{tpu_custom_call.1} parent=11 // pred_check_branch
          %289 = sbr.rel (%p287) target = $region32
        $region31: #{tpu_custom_call.1} parent=11 // pred_region
          _
        $region32: #{tpu_custom_call.1} parent=11 // pred_fallthru
          _
        // Predicated region
        $region33: #{tpu_custom_call.1} parent=11 // pred_check
          %p290 = pneg %p224
        $region34: #{tpu_custom_call.1} parent=11 // pred_check_branch
          %292 = sbr.rel (%p290) target = $region36
        $region35: #{tpu_custom_call.1} parent=11 // pred_region
          _
        $region36: #{tpu_custom_call.1} parent=11 // pred_fallthru
          _
      $region12: #{tpu_custom_call.1} parent=5 // pred_fallthru
        _
      %p293 = scmp.lt.s32.totalorder %s20, 2
      // Predicated region
      $region37: #{tpu_custom_call.1} parent=5 // pred_check
        %p294 = pneg %p293
      $region38: #{tpu_custom_call.1} parent=5 // pred_check_branch
        %296 = sbr.rel (%p294) target = $region40
      $region39: #{tpu_custom_call.1} parent=5 // pred_region
        // Predicated region
        $region41: #{tpu_custom_call.1} parent=39 // pred_check
          %p297 = pneg %p40
        $region42: #{tpu_custom_call.1} parent=39 // pred_check_branch
          %299 = sbr.rel (%p297) target = $region44
        $region43: #{tpu_custom_call.1} parent=39 // pred_region
          %s300 = smul.u32 2, %s20
          %p301 = scmp.lt.s32.totalorder %s300, 3
          %s302 = scalar_select %p301, %s300, 3
          %s303 = smul.addr %s302, 4
          %s304 = scalar_lea.vmem %s0, %s303
          %s305 = smul.u32 2, %s20
        $region44: #{tpu_custom_call.1} parent=39 // pred_fallthru
          _
        // Predicated region
        $region45: #{tpu_custom_call.1} parent=39 // pred_check
          %p306 = pneg %p66
        $region46: #{tpu_custom_call.1} parent=39 // pred_check_branch
          %308 = sbr.rel (%p306) target = $region48
        $region47: #{tpu_custom_call.1} parent=39 // pred_region
          %p309 = scmp.lt.s32.totalorder %s20, 1
          %s310 = scalar_select %p309, %s20, 1
          %s311 = smul.addr %s310, 8
          %s312 = scalar_lea.vmem %s1, %s311
        $region48: #{tpu_custom_call.1} parent=39 // pred_fallthru
          _
        // Predicated region
        $region49: #{tpu_custom_call.1} parent=39 // pred_check
          %p313 = pneg %p92
        $region50: #{tpu_custom_call.1} parent=39 // pred_check_branch
          %315 = sbr.rel (%p313) target = $region52
        $region51: #{tpu_custom_call.1} parent=39 // pred_region
          %p316 = scmp.lt.s32.totalorder %s20, 1
          %s317 = scalar_select %p316, %s20, 1
          %s318 = smul.addr %s317, 8
          %s319 = scalar_lea.vmem %s2, %s318
        $region52: #{tpu_custom_call.1} parent=39 // pred_fallthru
          _
      $region40: #{tpu_custom_call.1} parent=5 // pred_fallthru
        _
      %p320 = scmp.le.s32.totalorder 1, %s20
      %p321 = scmp.lt.s32.totalorder %s20, 3
      %p322 = pnand %p320, %p321
      %p323 = pneg %p322
      // Predicated region
      $region53: #{tpu_custom_call.1} parent=5 // pred_check
        _
      $region54: #{tpu_custom_call.1} parent=5 // pred_check_branch
        %325 = sbr.rel (%p322) target = $region56
      $region55: #{tpu_custom_call.1} parent=5 // pred_region
        %s326 = ssub.s32 %s20, 1
        // Predicated region
        $region57: #{tpu_custom_call.1} parent=55 // pred_check
          %p327 = pneg %p161
        $region58: #{tpu_custom_call.1} parent=55 // pred_check_branch
          %329 = sbr.rel (%p327) target = $region60
        $region59: #{tpu_custom_call.1} parent=55 // pred_region
          %330 = dma.done [#allocation5], 1024
        $region60: #{tpu_custom_call.1} parent=55 // pred_fallthru
          _
        %s331 = smul.u32 2, %s25
        %p332 = scmp.lt.s32.totalorder %s331, 3
        %s333 = scalar_select %p332, %s331, 3
        %s334 = smul.addr %s333, 4
        %s335 = scalar_lea.vmem %s0, %s334
        %p336 = pneg %p46
        %p337 = pneg %p43
        %p338 = scmp.lt.s32.totalorder %s25, 1
        %s339 = scalar_select %p338, %s25, 1
        %s340 = smul.addr %s339, 8
        %s341 = scalar_lea.vmem %s1, %s340
        %p342 = pneg %p72
        %p343 = pneg %p69
        %p344 = scmp.lt.s32.totalorder %s25, 1
        %s345 = scalar_select %p344, %s25, 1
        %s346 = smul.addr %s345, 8
        %s347 = scalar_lea.vmem %s2, %s346
        %p348 = pneg %p98
        %p349 = pneg %p95
        %p350 = pneg %p119
        %p351 = pneg %p116
        %p352 = pneg %p140
        %p353 = pneg %p137
        %p354 = pneg %p161
        %p355 = pneg %p158
        %p356 = pneg %p182
        %p357 = pneg %p179
        %p358 = pneg %p203
        %p359 = pneg %p200
        %p360 = pneg %p224
        %p361 = pneg %p221
        %p362 = pneg %p250
        %p363 = pneg %p247
        %s364 = sand.u32 %s237, 1
        %s365 = scalar_lea.sflag [#allocation6], %s364
        %s366 = sand.u32 %s237, 1
        %s367 = smul.addr %s366, 8
        %s368 = scalar_lea.vmem [#allocation7], %s367
        %s369 = smul.u32 2, %s25
        %p370 = scmp.lt.s32.totalorder %s369, 3
        %s371 = scalar_select %p370, %s369, 3
        %s372 = smul.addr %s371, 4
        %s373 = scalar_lea.vmem %s0, %s372
        %s374 = smul.u32 2, %s25
        %p375 = scmp.lt.s32.totalorder %s25, 1
        %s376 = scalar_select %p375, %s25, 1
        %s377 = smul.addr %s376, 8
        %s378 = scalar_lea.vmem %s1, %s377
        %p379 = scmp.lt.s32.totalorder %s25, 1
        %s380 = scalar_select %p379, %s25, 1
        %s381 = smul.addr %s380, 8
        %s382 = scalar_lea.vmem %s2, %s381
        %v384 = vld [vmem:[%s373] sm:$0xf]
        %v385 = vld [vmem:[%s373 + $0x4] sm:$0xf]
        %v386 = vld [vmem:[%s3] sm:$0xf]
        %v387 = vld [vmem:[%s3 + $0x4] sm:$0xf]
        %v388 = vld [vmem:[%s3 + $0x8] sm:$0xf]
        %v389 = vld [vmem:[%s3 + $0xc] sm:$0xf]
        %v390 = vld [vmem:[%s3 + $0x10] sm:$0xf]
        %v391 = vld [vmem:[%s3 + $0x14] sm:$0xf]
        %v392 = vld [vmem:[%s3 + $0x18] sm:$0xf]
        %v393 = vld [vmem:[%s3 + $0x1c] sm:$0xf]
        %v394 = vld [vmem:[%s3 + $0x20] sm:$0xf]
        %v395 = vld [vmem:[%s3 + $0x24] sm:$0xf]
        %v396 = vld [vmem:[%s3 + $0x28] sm:$0xf]
        %v397 = vld [vmem:[%s3 + $0x2c] sm:$0xf]
        %v398 = vld [vmem:[%s3 + $0x30] sm:$0xf]
        %v399 = vld [vmem:[%s3 + $0x34] sm:$0xf]
        %v400 = vld [vmem:[%s3 + $0x38] sm:$0xf]
        %v401 = vld [vmem:[%s3 + $0x3c] sm:$0xf]
        %v402 = vld [vmem:[%s4] sm:$0x1]
        %v404 = vlaneseq
        %v405 = vshrl.u32 %v404, 7
        %v406 = vsub.s32 0, %v405
        %v407 = vrot.slane %v402, %v406
        %v411 = vunpack.c.l.b16 %v384
        %v412 = vunpack.c.l.b16 %v385
        %v413 = vpack.c.b16 %v412, %v411
        %v431 = vunpack.c.l.b16 %v386
        %v432 = vunpack.c.l.b16 %v387
        %v433 = vunpack.c.l.b16 %v388
        %v434 = vunpack.c.l.b16 %v389
        %v435 = vunpack.c.l.b16 %v390
        %v436 = vunpack.c.l.b16 %v391
        %v437 = vunpack.c.l.b16 %v392
        %v438 = vunpack.c.l.b16 %v393
        %v439 = vunpack.c.l.b16 %v394
        %v440 = vunpack.c.l.b16 %v395
        %v441 = vunpack.c.l.b16 %v396
        %v442 = vunpack.c.l.b16 %v397
        %v443 = vunpack.c.l.b16 %v398
        %v444 = vunpack.c.l.b16 %v399
        %v445 = vunpack.c.l.b16 %v400
        %v446 = vunpack.c.l.b16 %v401
        %v447 = vpack.c.b16 %v432, %v431
        %v448 = vpack.c.b16 %v434, %v433
        %v449 = vpack.c.b16 %v436, %v435
        %v450 = vpack.c.b16 %v438, %v437
        %v451 = vpack.c.b16 %v440, %v439
        %v452 = vpack.c.b16 %v442, %v441
        %v453 = vpack.c.b16 %v444, %v443
        %v454 = vpack.c.b16 %v446, %v445
        %463 = vmatprep.subr.bf16.mxu0 0
        %464 = vmatpush1.bf16.msra.mxu0 %v454
        %465 = vmatprep.subr.bf16.mxu0 0
        %466 = vmatpush1.bf16.msra.mxu0 %v453
        %467 = vmatprep.subr.bf16.mxu0 0
        %468 = vmatpush1.bf16.msra.mxu0 %v452
        %469 = vmatprep.subr.bf16.mxu0 0
        %470 = vmatpush1.bf16.msra.mxu0 %v451
        %471 = vmatprep.subr.bf16.mxu0 0
        %472 = vmatpush1.bf16.msra.mxu0 %v450
        %473 = vmatprep.subr.bf16.mxu0 0
        %474 = vmatpush1.bf16.msra.mxu0 %v449
        %475 = vmatprep.subr.bf16.mxu0 0
        %476 = vmatpush1.bf16.msra.mxu0 %v448
        %477 = vmatprep.subr.bf16.mxu0 0
        %478 = vmatpush1.bf16.msra.mxu0 %v447
        %479 = vmatprep.subr.bf16.mxu0 0
        %480 = vmatpush2.bf16.msra.mxu0 0
        %481 = vmatprep.subr.bf16.mxu0 0
        %482 = vmatpush2.bf16.msra.mxu0 0
        %483 = vmatprep.subr.bf16.mxu0 0
        %484 = vmatpush2.bf16.msra.mxu0 0
        %485 = vmatprep.subr.bf16.mxu0 0
        %486 = vmatpush2.bf16.msra.mxu0 0
        %487 = vmatprep.subr.bf16.mxu0 0
        %488 = vmatpush2.bf16.msra.mxu0 0
        %489 = vmatprep.subr.bf16.mxu0 0
        %490 = vmatpush2.bf16.msra.mxu0 0
        %491 = vmatprep.subr.bf16.mxu0 0
        %492 = vmatpush2.bf16.msra.mxu0 0
        %493 = vmatprep.subr.bf16.mxu0 0
        %494 = vmatpush2.bf16.msra.mxu0 0
        %495 = vmatprep.mubr.bf16.mxu0 0
        %496 = vmatmul.mubr.bf16.gmra.mxu0 %v413
        %v497 = vpop.f32.mrf.mxu0
        %v498 = vadd.f32 %v407, %v497
        %v499 = vpop.f32.mrf.mxu0
        %v500 = vpop.f32.mrf.mxu0
        %v501 = vadd.f32 %v407, %v500
        %v502 = vpop.f32.mrf.mxu0
        %503 = vdwg.mxu0
        %v504 = vmax.f32 %v498, 0.0
        %v505 = vmax.f32 %v501, 0.0
        %v506 = vpack.c.bf16 %v505, %v504
        %v507 = vld [vmem:[#allocation4] sm:$0xf]
        %v508 = vld [vmem:[#allocation4 + $0x4] sm:$0xf]
        %v509 = vld [vmem:[#allocation4 + $0x8] sm:$0xf]
        %v510 = vld [vmem:[#allocation4 + $0xc] sm:$0xf]
        %v511 = vld [vmem:[#allocation4 + $0x10] sm:$0xf]
        %v512 = vld [vmem:[#allocation4 + $0x14] sm:$0xf]
        %v513 = vld [vmem:[#allocation4 + $0x18] sm:$0xf]
        %v514 = vld [vmem:[#allocation4 + $0x1c] sm:$0xf]
        %v515 = vld [vmem:[#allocation4 + $0x20] sm:$0xf]
        %v516 = vld [vmem:[#allocation4 + $0x24] sm:$0xf]
        %v517 = vld [vmem:[#allocation4 + $0x28] sm:$0xf]
        %v518 = vld [vmem:[#allocation4 + $0x2c] sm:$0xf]
        %v519 = vld [vmem:[#allocation4 + $0x30] sm:$0xf]
        %v520 = vld [vmem:[#allocation4 + $0x34] sm:$0xf]
        %v521 = vld [vmem:[#allocation4 + $0x38] sm:$0xf]
        %v522 = vld [vmem:[#allocation4 + $0x3c] sm:$0xf]
        %v523 = vld [vmem:[%s6] sm:$0x1]
        %v525 = vlaneseq
        %v526 = vshrl.u32 %v525, 7
        %v527 = vsub.s32 0, %v526
        %v528 = vrot.slane %v523, %v527
        %v546 = vunpack.c.l.b16 %v507
        %v547 = vunpack.c.l.b16 %v508
        %v548 = vunpack.c.l.b16 %v509
        %v549 = vunpack.c.l.b16 %v510
        %v550 = vunpack.c.l.b16 %v511
        %v551 = vunpack.c.l.b16 %v512
        %v552 = vunpack.c.l.b16 %v513
        %v553 = vunpack.c.l.b16 %v514
        %v554 = vunpack.c.l.b16 %v515
        %v555 = vunpack.c.l.b16 %v516
        %v556 = vunpack.c.l.b16 %v517
        %v557 = vunpack.c.l.b16 %v518
        %v558 = vunpack.c.l.b16 %v519
        %v559 = vunpack.c.l.b16 %v520
        %v560 = vunpack.c.l.b16 %v521
        %v561 = vunpack.c.l.b16 %v522
        %v562 = vpack.c.b16 %v547, %v546
        %v563 = vpack.c.b16 %v549, %v548
        %v564 = vpack.c.b16 %v551, %v550
        %v565 = vpack.c.b16 %v553, %v552
        %v566 = vpack.c.b16 %v555, %v554
        %v567 = vpack.c.b16 %v557, %v556
        %v568 = vpack.c.b16 %v559, %v558
        %v569 = vpack.c.b16 %v561, %v560
        %578 = vmatprep.subr.bf16.mxu0 0
        %579 = vmatpush1.bf16.msra.mxu0 %v569
        %580 = vmatprep.subr.bf16.mxu0 0
        %581 = vmatpush1.bf16.msra.mxu0 %v568
        %582 = vmatprep.subr.bf16.mxu0 0
        %583 = vmatpush1.bf16.msra.mxu0 %v567
        %584 = vmatprep.subr.bf16.mxu0 0
        %585 = vmatpush1.bf16.msra.mxu0 %v566
        %586 = vmatprep.subr.bf16.mxu0 0
        %587 = vmatpush1.bf16.msra.mxu0 %v565
        %588 = vmatprep.subr.bf16.mxu0 0
        %589 = vmatpush1.bf16.msra.mxu0 %v564
        %590 = vmatprep.subr.bf16.mxu0 0
        %591 = vmatpush1.bf16.msra.mxu0 %v563
        %592 = vmatprep.subr.bf16.mxu0 0
        %593 = vmatpush1.bf16.msra.mxu0 %v562
        %594 = vmatprep.subr.bf16.mxu0 0
        %595 = vmatpush2.bf16.msra.mxu0 0
        %596 = vmatprep.subr.bf16.mxu0 0
        %597 = vmatpush2.bf16.msra.mxu0 0
        %598 = vmatprep.subr.bf16.mxu0 0
        %599 = vmatpush2.bf16.msra.mxu0 0
        %600 = vmatprep.subr.bf16.mxu0 0
        %601 = vmatpush2.bf16.msra.mxu0 0
        %602 = vmatprep.subr.bf16.mxu0 0
        %603 = vmatpush2.bf16.msra.mxu0 0
        %604 = vmatprep.subr.bf16.mxu0 0
        %605 = vmatpush2.bf16.msra.mxu0 0
        %606 = vmatprep.subr.bf16.mxu0 0
        %607 = vmatpush2.bf16.msra.mxu0 0
        %608 = vmatprep.subr.bf16.mxu0 0
        %609 = vmatpush2.bf16.msra.mxu0 0
        %610 = vmatprep.mubr.bf16.mxu0 0
        %611 = vmatmul.mubr.bf16.gmra.mxu0 %v506
        %v612 = vpop.f32.mrf.mxu0
        %v613 = vadd.f32 %v528, %v612
        %v614 = vpop.f32.mrf.mxu0
        %v615 = vpop.f32.mrf.mxu0
        %v616 = vadd.f32 %v528, %v615
        %v617 = vpop.f32.mrf.mxu0
        %618 = vdwg.mxu0
        %v619 = vmax.f32 %v613, 0.0
        %v620 = vmax.f32 %v616, 0.0
        %v621 = vpack.c.bf16 %v620, %v619
        %v622 = vld [vmem:[%s7] sm:$0xf]
        %v623 = vld [vmem:[%s7 + $0x4] sm:$0xf]
        %v624 = vld [vmem:[%s7 + $0x8] sm:$0xf]
        %v625 = vld [vmem:[%s7 + $0xc] sm:$0xf]
        %v626 = vld [vmem:[%s7 + $0x10] sm:$0xf]
        %v627 = vld [vmem:[%s7 + $0x14] sm:$0xf]
        %v628 = vld [vmem:[%s7 + $0x18] sm:$0xf]
        %v629 = vld [vmem:[%s7 + $0x1c] sm:$0xf]
        %v630 = vld [vmem:[%s7 + $0x20] sm:$0xf]
        %v631 = vld [vmem:[%s7 + $0x24] sm:$0xf]
        %v632 = vld [vmem:[%s7 + $0x28] sm:$0xf]
        %v633 = vld [vmem:[%s7 + $0x2c] sm:$0xf]
        %v634 = vld [vmem:[%s7 + $0x30] sm:$0xf]
        %v635 = vld [vmem:[%s7 + $0x34] sm:$0xf]
        %v636 = vld [vmem:[%s7 + $0x38] sm:$0xf]
        %v637 = vld [vmem:[%s7 + $0x3c] sm:$0xf]
        %v654 = vunpack.c.l.b16 %v622
        %v655 = vunpack.c.l.b16 %v623
        %v656 = vunpack.c.l.b16 %v624
        %v657 = vunpack.c.l.b16 %v625
        %v658 = vunpack.c.l.b16 %v626
        %v659 = vunpack.c.l.b16 %v627
        %v660 = vunpack.c.l.b16 %v628
        %v661 = vunpack.c.l.b16 %v629
        %v662 = vunpack.c.l.b16 %v630
        %v663 = vunpack.c.l.b16 %v631
        %v664 = vunpack.c.l.b16 %v632
        %v665 = vunpack.c.l.b16 %v633
        %v666 = vunpack.c.l.b16 %v634
        %v667 = vunpack.c.l.b16 %v635
        %v668 = vunpack.c.l.b16 %v636
        %v669 = vunpack.c.l.b16 %v637
        %v670 = vpack.c.b16 %v655, %v654
        %v671 = vpack.c.b16 %v657, %v656
        %v672 = vpack.c.b16 %v659, %v658
        %v673 = vpack.c.b16 %v661, %v660
        %v674 = vpack.c.b16 %v663, %v662
        %v675 = vpack.c.b16 %v665, %v664
        %v676 = vpack.c.b16 %v667, %v666
        %v677 = vpack.c.b16 %v669, %v668
        %686 = vmatprep.subr.bf16.mxu0 0
        %687 = vmatpush1.bf16.msra.mxu0 %v677
        %688 = vmatprep.subr.bf16.mxu0 0
        %689 = vmatpush1.bf16.msra.mxu0 %v676
        %690 = vmatprep.subr.bf16.mxu0 0
        %691 = vmatpush1.bf16.msra.mxu0 %v675
        %692 = vmatprep.subr.bf16.mxu0 0
        %693 = vmatpush1.bf16.msra.mxu0 %v674
        %694 = vmatprep.subr.bf16.mxu0 0
        %695 = vmatpush1.bf16.msra.mxu0 %v673
        %696 = vmatprep.subr.bf16.mxu0 0
        %697 = vmatpush1.bf16.msra.mxu0 %v672
        %698 = vmatprep.subr.bf16.mxu0 0
        %699 = vmatpush1.bf16.msra.mxu0 %v671
        %700 = vmatprep.subr.bf16.mxu0 0
        %701 = vmatpush1.bf16.msra.mxu0 %v670
        %702 = vmatprep.subr.bf16.mxu0 0
        %703 = vmatpush2.bf16.msra.mxu0 0
        %704 = vmatprep.subr.bf16.mxu0 0
        %705 = vmatpush2.bf16.msra.mxu0 0
        %706 = vmatprep.subr.bf16.mxu0 0
        %707 = vmatpush2.bf16.msra.mxu0 0
        %708 = vmatprep.subr.bf16.mxu0 0
        %709 = vmatpush2.bf16.msra.mxu0 0
        %710 = vmatprep.subr.bf16.mxu0 0
        %711 = vmatpush2.bf16.msra.mxu0 0
        %712 = vmatprep.subr.bf16.mxu0 0
        %713 = vmatpush2.bf16.msra.mxu0 0
        %714 = vmatprep.subr.bf16.mxu0 0
        %715 = vmatpush2.bf16.msra.mxu0 0
        %716 = vmatprep.subr.bf16.mxu0 0
        %717 = vmatpush2.bf16.msra.mxu0 0
        %718 = vmatprep.mubr.bf16.mxu0 0
        %719 = vmatmul.mubr.bf16.gmra.mxu0 %v621
        %v720 = vpop.f32.mrf.mxu0
        %v721 = vadd.f32 0.0, %v720
        %v722 = vpop.f32.mrf.mxu0
        %v723 = vpop.f32.mrf.mxu0
        %v724 = vadd.f32 0.0, %v723
        %v725 = vpop.f32.mrf.mxu0
        %726 = vdwg.mxu0
        %vm727 = vcmask 31744
        %728 = vst.msk [vmem:[#allocation2] sm:$0xff] %vm727, %v721
        %730 = vrot.lane.b32.xlu0 %v724, 4
        %v731 = vpop.permute.xlu0 %730
        %vm733 = vcmask 64544
        %734 = vst.msk [vmem:[#allocation2] sm:$0xff] %vm733, %v731
        %v735 = vld [vmem:[#allocation2] sm:$0xff]
        %s736 = sld [smem:[#allocation3]]
        %v737 = vstv %s736
        %v738 = vadd.f32 %v735, %v737
        %v739 = vld [vmem:[%s378] sm:$0xff]
        %v740 = vld [vmem:[%s382] sm:$0xff]
        %v741 = vmax.f32 %v738, 0.0
        %v742 = vmul.f32 %v738, %v739
        %v743 = vsub.f32 %v741, %v742
        %v744 = vand.u32 2147483647, %v738
        %v745 = vsub.f32 0.0, %v744
        %v746 = vmul.f32 %v745, 1.442695
        %v747 = vpow.pop %v746
        %v748 = vadd.f32 %v747, 1.0
        %v749 = vlog2.pop %v748
        %v750 = vmul.f32 %v749, 0.6931472
        %v751 = vadd.f32 %v743, %v750
        %v752 = vmul.f32 %v751, %v740
        %vm753 = vcmp.gt.f32.partialorder %v738, 0.0
        %v754 = vsel %vm753, 1, 0
        %v755 = vcvt.s32.f32 %v754
        %vm756 = vcmp.eq.f32.partialorder %v755, %v739
        %v757 = vsel %vm756, 1, 0
        %v758 = vcvt.s32.f32 %v757
        %v759 = vmul.f32 %v758, %v740
        %v760 = vmul.f32 %v755, %v739
        %v761 = vmul.f32 %v760, %v740
        %v762 = vsub.f32 1.0, %v739
        %v763 = vmul.f32 %v755, %v762
        %v764 = vmul.f32 %v763, %v740
        %v765 = vsub.f32 1.0, %v755
        %v766 = vmul.f32 %v765, %v739
        %v767 = vmul.f32 %v766, %v740
        %vm768 = vcmask 64512
        %v769 = vsel %vm768, %v752, 0.0
        %770 = vadd.xlane.f32.xlu0 %v769
        %v771 = vpop.xlane.xlu0 %770
        %v772 = vsel %vm768, %v759, 0.0
        %773 = vadd.xlane.f32.xlu0 %v772
        %v774 = vpop.xlane.xlu0 %773
        %v775 = vsel %vm768, %v761, 0.0
        %776 = vadd.xlane.f32.xlu0 %v775
        %v777 = vpop.xlane.xlu0 %776
        %v778 = vsel %vm768, %v764, 0.0
        %779 = vadd.xlane.f32.xlu0 %v778
        %v780 = vpop.xlane.xlu0 %779
        %v781 = vsel %vm768, %v767, 0.0
        %782 = vadd.xlane.f32.xlu0 %v781
        %v783 = vpop.xlane.xlu0 %782
        %v784 = vsel %vm768, %v740, 0.0
        %785 = vadd.xlane.f32.xlu0 %v784
        %v786 = vpop.xlane.xlu0 %785
        %v787 = vmax.f32 %v786, 1.0
        %v788 = vrcp.pop %v787
        %v789 = vmul.f32 %v771, %v788
        %v790 = vmul.f32 %v774, %v788
        %v791 = vadd.f32 %v777, %v780
        %vm792 = vcmp.gt.f32.partialorder %v791, 0.0
        %v793 = vmax.f32 %v791, 1e-12
        %v794 = vrcp.pop %v793
        %v795 = vmul.f32 %v777, %v794
        %v796 = vsel %vm792, %v795, 0.0
        %v797 = vadd.f32 %v777, %v783
        %vm798 = vcmp.gt.f32.partialorder %v797, 0.0
        %v799 = vmax.f32 %v797, 1e-12
        %v800 = vrcp.pop %v799
        %v801 = vmul.f32 %v777, %v800
        %v802 = vsel %vm798, %v801, 0.0
        %v803 = vadd.f32 %v796, %v802
        %vm804 = vcmp.gt.f32.partialorder %v803, 0.0
        %v805 = vmul.f32 %v796, 2.0
        %v806 = vmul.f32 %v805, %v802
        %v807 = vmax.f32 %v803, 1e-12
        %v808 = vrcp.pop %v807
        %v809 = vmul.f32 %v806, %v808
        %v810 = vsel %vm804, %v809, 0.0
        %811 = vst [vmem:[%s368] sm:$0xff] 0.0
        %vm812 = vcmask 7168
        %813 = vst.msk [vmem:[%s368] sm:$0xff] %vm812, %v789
        %vm814 = vcmask 15368
        %815 = vst.msk [vmem:[%s368] sm:$0xff] %vm814, %v790
        %vm816 = vcmask 23568
        %817 = vst.msk [vmem:[%s368] sm:$0xff] %vm816, %v796
        %vm818 = vcmask 31768
        %819 = vst.msk [vmem:[%s368] sm:$0xff] %vm818, %v802
        %vm820 = vcmask 39968
        %821 = vst.msk [vmem:[%s368] sm:$0xff] %vm820, %v810
        %s822 = sand.u32 %s237, 1
        %s823 = scalar_lea.sflag [#allocation6], %s822
        %s824 = sand.u32 %s237, 1
        %s825 = smul.addr %s824, 8
        %s826 = scalar_lea.vmem [#allocation7], %s825
        // Predicated region
        $region61: #{tpu_custom_call.1} parent=55 // pred_check
          %p827 = pneg %p247
        $region62: #{tpu_custom_call.1} parent=55 // pred_check_branch
          %829 = sbr.rel (%p827) target = $region64
        $region63: #{tpu_custom_call.1} parent=55 // pred_region
          %s831 = ssub.s32 128, 128
          %832 = vsyncadd %s823, %s831
          %s833 = smul.addr %s25, 128
          %s834 = scalar_lea.hbm %s9, %s833
          %s836 = sshll.u32 %s826, 4
          %s837 = int_to_ptr.vmem [resolvable:$true] %s836
          %839 = dma.vmem_to_hbm [thread:$0]  %s837, 128, %s834, %s823
        $region64: #{tpu_custom_call.1} parent=55 // pred_fallthru
          _
      $region56: #{tpu_custom_call.1} parent=5 // pred_fallthru
        _
      %p840 = scmp.le.s32.totalorder 2, %s20
      // Predicated region
      $region65: #{tpu_custom_call.1} parent=5 // pred_check
        %p841 = pneg %p840
      $region66: #{tpu_custom_call.1} parent=5 // pred_check_branch
        %843 = sbr.rel (%p841) target = $region68
      $region67: #{tpu_custom_call.1} parent=5 // pred_region
        %s844 = ssub.s32 %s20, 2
        // Predicated region
        $region69: #{tpu_custom_call.1} parent=67 // pred_check
          %p845 = pneg %p253
        $region70: #{tpu_custom_call.1} parent=67 // pred_check_branch
          %847 = sbr.rel (%p845) target = $region72
        $region71: #{tpu_custom_call.1} parent=67 // pred_region
          %s848 = sand.u32 %s238, 1
          %s849 = scalar_lea.sflag [#allocation6], %s848
          %s850 = sand.u32 %s238, 1
          %s851 = smul.addr %s850, 8
          %s852 = scalar_lea.vmem [#allocation7], %s851
          %853 = dma.done %s849, 128
        $region72: #{tpu_custom_call.1} parent=67 // pred_fallthru
          _
      $region68: #{tpu_custom_call.1} parent=5 // pred_fallthru
        _
    $region6: #{tpu_custom_call.1} parent=1 // loop_footer
      %s24 = sadd.s32 1, %s20
    $region7: #{tpu_custom_call.1} parent=1 // loop_footer_branch
      %19 = sbr.rel target = $region3
    $region8: #{tpu_custom_call.1} parent=1 // loop_exit
      _
    %854 = vsyncpa [#allocation5], 1
    %s855 = scalar_lea.sflag [#allocation5], 1
    %856 = vsyncpa %s855, 1
    %857 = vsyncpa [#allocation6], 1
    %s858 = scalar_lea.sflag [#allocation6], 1
    %859 = vsyncpa %s858, 1

</llo_original>
